<compile_context>
chip_gen: v6e
topology: v6e:2x2x1
jax: 0.10.0
libtpu: 0.0.40
codegen_flags: <defaults>
</compile_context>

<pallas_src>
import jax
import jax.numpy as jnp
from jax import lax
from jax.experimental import pallas as pl
from jax.experimental.pallas import tpu as pltpu

CIN, COUT, KSIZE, PAD = 1, 12, 12, 7


def _conv_gemm_kernel(a_ref, w_ref, b_ref, o_ref):
    # a_ref: (K, Lp)        im2col patches, whole batch folded into lanes
    # w_ref: (Cout_pad, K)  weights
    # b_ref: (Cout_pad, 1)  bias (constant, fetched once)
    # o_ref: (Cout_pad, Lp) channel-major output
    acc = jnp.dot(w_ref[...], a_ref[...], preferred_element_type=jnp.float32)
    o_ref[...] = (acc + b_ref[...]).astype(o_ref.dtype)


def conv2d_pallas(x, weight, bias):
    """x: (N, Cin, H, W) f32, weight: (Cout, Cin, KH, KW), bias: (Cout,)."""
    N, Cin, H, W = x.shape
    Cout, _, KH, KW = weight.shape
    Ho = H + 2 * PAD - KH + 1
    Wo = W + 2 * PAD - KW + 1
    K = Cin * KH * KW                      # 144
    L = Ho * Wo                            # 361
    NL = N * L                             # 722
    Lp = pl.cdiv(NL, 128) * 128            # 722 -> 768, lane-dense
    Cout_pad = pl.cdiv(Cout, 8) * 8        # 12  -> 16, sublane aligned

    # ---- im2col glue: patches in "CNHW" layout (K, N, Ho, Wo) ------------
    # Feature ordering of the patch axis is (Cin, KH, KW); with Cin=1 this is
    # exactly (kh, kw), matching weight.reshape(Cout, K) below.
    patches = lax.conv_general_dilated_patches(
        x, filter_shape=(KH, KW), window_strides=(1, 1),
        padding=((PAD, PAD), (PAD, PAD)),
        dimension_numbers=("NCHW", "OIHW", "CNHW"),
        precision=lax.Precision.HIGHEST)
    a = patches.reshape(K, NL)                       # free collapse of trailing dims
    a = jnp.pad(a, ((0, 0), (0, Lp - NL)))           # lane-dense 722 -> 768

    w_mat = jnp.pad(weight.reshape(Cout, K), ((0, Cout_pad - Cout), (0, 0)))
    b_mat = jnp.pad(bias, (0, Cout_pad - Cout)).reshape(Cout_pad, 1)

    out = pl.pallas_call(
        _conv_gemm_kernel,
        out_shape=jax.ShapeDtypeStruct((Cout_pad, Lp), x.dtype),
        in_specs=[
            pl.BlockSpec(memory_space=pltpu.MemorySpace.VMEM),   # patches
            pl.BlockSpec(memory_space=pltpu.MemorySpace.VMEM),   # weights
            pl.BlockSpec(memory_space=pltpu.MemorySpace.VMEM),   # bias
        ],
        out_specs=pl.BlockSpec(memory_space=pltpu.MemorySpace.VMEM),
        cost_estimate=pl.CostEstimate(
            flops=2 * Cout_pad * K * Lp,
            transcendentals=0,
            bytes_accessed=4 * (K * Lp + Cout_pad * K + Cout_pad + Cout_pad * Lp)),
    )(a, w_mat, b_mat)

    # Drop channel/lane padding; columns are ordered (n, i, j).
    y = out[:Cout, :NL].reshape(Cout, N, Ho, Wo)
    return jnp.transpose(y, (1, 0, 2, 3))            # (N, Cout, Ho, Wo)


if __name__ == "__main__":
    key = jax.random.PRNGKey(0)
    kx, kw, kb = jax.random.split(key, 3)

    # Small shapes consistent with the module: N=2, Cin=1, H=W=16.
    x = jax.random.normal(kx, (2, CIN, 16, 16), dtype=jnp.float32)
    weight = (jax.random.normal(kw, (COUT, CIN, KSIZE, KSIZE), dtype=jnp.float32)
              * 0.1)
    bias = jax.random.normal(kb, (COUT,), dtype=jnp.float32) * 0.1

    conv_fn = jax.jit(conv2d_pallas)
    y = jax.block_until_ready(conv_fn(x, weight, bias))

    # Self-check vs XLA's conv (same semantics as torch Conv2d with groups=1).
    # Reference forced to HIGHEST precision; tolerance leaves margin for the
    # MXU's reduced-precision f32 multiply passes on some generations.
    ref = lax.conv_general_dilated(
        x, weight, window_strides=(1, 1),
        padding=((PAD, PAD), (PAD, PAD)),
        dimension_numbers=("NCHW", "OIHW", "NCHW"),
        precision=lax.Precision.HIGHEST) + bias.reshape(1, -1, 1, 1)
    assert y.shape == ref.shape, (y.shape, ref.shape)
    assert jnp.allclose(y, ref, atol=2e-2, rtol=2e-2), "mismatch vs reference conv"

    print("KERNEL_OK")
</pallas_src>

<mosaic_0001>
module attributes {stable_mosaic.version = 11 : i64} {
  func.func @_conv_gemm_kernel(%arg0: memref<144x768xf32, #tpu.memory_space<vmem>>, %arg1: memref<16x144xf32, #tpu.memory_space<vmem>>, %arg2: memref<16x1xf32, #tpu.memory_space<vmem>>, %arg3: memref<16x768xf32, #tpu.memory_space<vmem>>) attributes {dimension_semantics = [], scalar_prefetch = 0 : i64, scratch_operands = 0 : i64, tpu.core_type = #tpu.core_type<tc>} {
    %c0 = arith.constant 0 : index
    %c0_0 = arith.constant 0 : index
    %0 = vector.load %arg1[%c0, %c0_0] : memref<16x144xf32, #tpu.memory_space<vmem>>, vector<16x144xf32>
    %c0_1 = arith.constant 0 : index
    %c0_2 = arith.constant 0 : index
    %1 = vector.load %arg0[%c0_1, %c0_2] : memref<144x768xf32, #tpu.memory_space<vmem>>, vector<144x768xf32>
    %cst = arith.constant dense<0.000000e+00> : vector<16x768xf32>
    %2 = tpu.matmul %0, %1, %cst {dimension_numbers = #tpu.dot_dimension_numbers<[1], [0], [0], [1], [0, 0, 1, 1], [], []>} : vector<16x144xf32>, vector<144x768xf32>, vector<16x768xf32> -> vector<16x768xf32>
    %c0_3 = arith.constant 0 : index
    %c0_4 = arith.constant 0 : index
    %3 = vector.load %arg2[%c0_3, %c0_4] : memref<16x1xf32, #tpu.memory_space<vmem>>, vector<16x1xf32>
    %4 = vector.broadcast %3 : vector<16x1xf32> to vector<16x768xf32>
    %5 = arith.addf %2, %4 : vector<16x768xf32>
    %c0_5 = arith.constant 0 : index
    %c0_6 = arith.constant 0 : index
    %6 = vector.load %arg3[%c0_5, %c0_6] : memref<16x768xf32, #tpu.memory_space<vmem>>, vector<16x768xf32>
    tpu.vector_store %arg3[%c0_5, %c0_6], %5 {strides = array<i32>} : memref<16x768xf32, #tpu.memory_space<vmem>>, vector<16x768xf32>,
    return
  }
}

</mosaic_0001>

<llo_original>
// kernel: conv2d_pallas.1
$region0: #{conv2d_pallas.1}
  #allocation0 [shape = 'u32[]', space=smem, size = 0x4, offset = 0x4, fixed_abs, tag = 'smem constant byte address 0x4 - core index']
  #allocation1 [shape = 'u32[144,128]{1,0:T(1,128)}', space=vmem, size = 0x12000, scoped, tag = 'internal scratch']
  %s0 = inlined_call_operand.vmem [shape: f32[144,768], index: 0, kind: input, shape index: {}]
  %s1 = inlined_call_operand.vmem [shape: f32[16,144], index: 1, kind: input, shape index: {}]
  %s2 = inlined_call_operand.vmem [shape: f32[16,1], index: 2, kind: input, shape index: {}]
  %s3 = inlined_call_operand.vmem [shape: f32[16,768], index: 3, kind: output, shape index: {}]
  %s4 = sld [smem:[#allocation0]]
  $region22: #{conv2d_pallas.1} parent=0
    _
  %s6 = ssub.s32 1, %s4
  %s7 = scalar_select 0, %s6, %s4
  // Predicated region
  $region2: #{conv2d_pallas.1} parent=0 // pred_check
    _
  $region3: #{conv2d_pallas.1} parent=0 // pred_check_branch
    %9 = sbr.rel (0) target = $region5
  $region4: #{conv2d_pallas.1} parent=0 // pred_region
    _
  $region5: #{conv2d_pallas.1} parent=0 // pred_fallthru
    _
  // Predicated region
  $region6: #{conv2d_pallas.1} parent=0 // pred_check
    _
  $region7: #{conv2d_pallas.1} parent=0 // pred_check_branch
    %11 = sbr.rel (0) target = $region9
  $region8: #{conv2d_pallas.1} parent=0 // pred_region
    _
  $region9: #{conv2d_pallas.1} parent=0 // pred_fallthru
    _
  // Predicated region
  $region10: #{conv2d_pallas.1} parent=0 // pred_check
    _
  $region11: #{conv2d_pallas.1} parent=0 // pred_check_branch
    %13 = sbr.rel (0) target = $region13
  $region12: #{conv2d_pallas.1} parent=0 // pred_region
    _
  $region13: #{conv2d_pallas.1} parent=0 // pred_fallthru
    _
  %v14 = vld [vmem:[%s1] sm:$0xff]
  %v15 = vld [vmem:[%s1 + $0x8] sm:$0xff]
  %v16 = vld [vmem:[%s1 + $0x10] sm:$0xff]
  %v17 = vld [vmem:[%s1 + $0x18] sm:$0xff]
  %v18 = vld [vmem:[%s0] sm:$0xff]
  %v19 = vld [vmem:[%s0 + $0x8] sm:$0xff]
  %v20 = vld [vmem:[%s0 + $0x10] sm:$0xff]
  %v21 = vld [vmem:[%s0 + $0x18] sm:$0xff]
  %v22 = vld [vmem:[%s0 + $0x20] sm:$0xff]
  %v23 = vld [vmem:[%s0 + $0x28] sm:$0xff]
  %v24 = vld [vmem:[%s0 + $0x30] sm:$0xff]
  %v25 = vld [vmem:[%s0 + $0x38] sm:$0xff]
  %v26 = vld [vmem:[%s0 + $0x40] sm:$0xff]
  %v27 = vld [vmem:[%s0 + $0x48] sm:$0xff]
  %v28 = vld [vmem:[%s0 + $0x50] sm:$0xff]
  %v29 = vld [vmem:[%s0 + $0x58] sm:$0xff]
  %v30 = vld [vmem:[%s0 + $0x60] sm:$0xff]
  %v31 = vld [vmem:[%s0 + $0x68] sm:$0xff]
  %v32 = vld [vmem:[%s0 + $0x70] sm:$0xff]
  %v33 = vld [vmem:[%s0 + $0x78] sm:$0xff]
  %v34 = vld [vmem:[%s0 + $0x80] sm:$0xff]
  %v35 = vld [vmem:[%s0 + $0x88] sm:$0xff]
  %v36 = vld [vmem:[%s0 + $0x90] sm:$0xff]
  %v37 = vld [vmem:[%s0 + $0x98] sm:$0xff]
  %v38 = vld [vmem:[%s0 + $0xa0] sm:$0xff]
  %v39 = vld [vmem:[%s0 + $0xa8] sm:$0xff]
  %v40 = vld [vmem:[%s0 + $0xb0] sm:$0xff]
  %v41 = vld [vmem:[%s0 + $0xb8] sm:$0xff]
  %v42 = vld [vmem:[%s0 + $0xc0] sm:$0xff]
  %v43 = vld [vmem:[%s0 + $0xc8] sm:$0xff]
  %v44 = vld [vmem:[%s0 + $0xd0] sm:$0xff]
  %v45 = vld [vmem:[%s0 + $0xd8] sm:$0xff]
  %v46 = vld [vmem:[%s0 + $0xe0] sm:$0xff]
  %v47 = vld [vmem:[%s0 + $0xe8] sm:$0xff]
  %v48 = vld [vmem:[%s0 + $0xf0] sm:$0xff]
  %v49 = vld [vmem:[%s0 + $0xf8] sm:$0xff]
  %v50 = vld [vmem:[%s0 + $0x100] sm:$0xff]
  %v51 = vld [vmem:[%s0 + $0x108] sm:$0xff]
  %v52 = vld [vmem:[%s0 + $0x110] sm:$0xff]
  %v53 = vld [vmem:[%s0 + $0x118] sm:$0xff]
  %v54 = vld [vmem:[%s0 + $0x120] sm:$0xff]
  %v55 = vld [vmem:[%s0 + $0x128] sm:$0xff]
  %v56 = vld [vmem:[%s0 + $0x130] sm:$0xff]
  %v57 = vld [vmem:[%s0 + $0x138] sm:$0xff]
  %v58 = vld [vmem:[%s0 + $0x140] sm:$0xff]
  %v59 = vld [vmem:[%s0 + $0x148] sm:$0xff]
  %v60 = vld [vmem:[%s0 + $0x150] sm:$0xff]
  %v61 = vld [vmem:[%s0 + $0x158] sm:$0xff]
  %v62 = vld [vmem:[%s0 + $0x160] sm:$0xff]
  %v63 = vld [vmem:[%s0 + $0x168] sm:$0xff]
  %v64 = vld [vmem:[%s0 + $0x170] sm:$0xff]
  %v65 = vld [vmem:[%s0 + $0x178] sm:$0xff]
  %v66 = vld [vmem:[%s0 + $0x180] sm:$0xff]
  %v67 = vld [vmem:[%s0 + $0x188] sm:$0xff]
  %v68 = vld [vmem:[%s0 + $0x190] sm:$0xff]
  %v69 = vld [vmem:[%s0 + $0x198] sm:$0xff]
  %v70 = vld [vmem:[%s0 + $0x1a0] sm:$0xff]
  %v71 = vld [vmem:[%s0 + $0x1a8] sm:$0xff]
  %v72 = vld [vmem:[%s0 + $0x1b0] sm:$0xff]
  %v73 = vld [vmem:[%s0 + $0x1b8] sm:$0xff]
  %v74 = vld [vmem:[%s0 + $0x1c0] sm:$0xff]
  %v75 = vld [vmem:[%s0 + $0x1c8] sm:$0xff]
  %v76 = vld [vmem:[%s0 + $0x1d0] sm:$0xff]
  %v77 = vld [vmem:[%s0 + $0x1d8] sm:$0xff]
  %v78 = vld [vmem:[%s0 + $0x1e0] sm:$0xff]
  %v79 = vld [vmem:[%s0 + $0x1e8] sm:$0xff]
  %v80 = vld [vmem:[%s0 + $0x1f0] sm:$0xff]
  %v81 = vld [vmem:[%s0 + $0x1f8] sm:$0xff]
  %v82 = vld [vmem:[%s0 + $0x200] sm:$0xff]
  %v83 = vld [vmem:[%s0 + $0x208] sm:$0xff]
  %v84 = vld [vmem:[%s0 + $0x210] sm:$0xff]
  %v85 = vld [vmem:[%s0 + $0x218] sm:$0xff]
  %v86 = vld [vmem:[%s0 + $0x220] sm:$0xff]
  %v87 = vld [vmem:[%s0 + $0x228] sm:$0xff]
  %v88 = vld [vmem:[%s0 + $0x230] sm:$0xff]
  %v89 = vld [vmem:[%s0 + $0x238] sm:$0xff]
  %v90 = vld [vmem:[%s0 + $0x240] sm:$0xff]
  %v91 = vld [vmem:[%s0 + $0x248] sm:$0xff]
  %v92 = vld [vmem:[%s0 + $0x250] sm:$0xff]
  %v93 = vld [vmem:[%s0 + $0x258] sm:$0xff]
  %v94 = vld [vmem:[%s0 + $0x260] sm:$0xff]
  %v95 = vld [vmem:[%s0 + $0x268] sm:$0xff]
  %v96 = vld [vmem:[%s0 + $0x270] sm:$0xff]
  %v97 = vld [vmem:[%s0 + $0x278] sm:$0xff]
  %v98 = vld [vmem:[%s0 + $0x280] sm:$0xff]
  %v99 = vld [vmem:[%s0 + $0x288] sm:$0xff]
  %v100 = vld [vmem:[%s0 + $0x290] sm:$0xff]
  %v101 = vld [vmem:[%s0 + $0x298] sm:$0xff]
  %v102 = vld [vmem:[%s0 + $0x2a0] sm:$0xff]
  %v103 = vld [vmem:[%s0 + $0x2a8] sm:$0xff]
  %v104 = vld [vmem:[%s0 + $0x2b0] sm:$0xff]
  %v105 = vld [vmem:[%s0 + $0x2b8] sm:$0xff]
  %v106 = vld [vmem:[%s0 + $0x2c0] sm:$0xff]
  %v107 = vld [vmem:[%s0 + $0x2c8] sm:$0xff]
  %v108 = vld [vmem:[%s0 + $0x2d0] sm:$0xff]
  %v109 = vld [vmem:[%s0 + $0x2d8] sm:$0xff]
  %v110 = vld [vmem:[%s0 + $0x2e0] sm:$0xff]
  %v111 = vld [vmem:[%s0 + $0x2e8] sm:$0xff]
  %v112 = vld [vmem:[%s0 + $0x2f0] sm:$0xff]
  %v113 = vld [vmem:[%s0 + $0x2f8] sm:$0xff]
  %v114 = vld [vmem:[%s0 + $0x300] sm:$0xff]
  %v115 = vld [vmem:[%s0 + $0x308] sm:$0xff]
  %v116 = vld [vmem:[%s0 + $0x310] sm:$0xff]
  %v117 = vld [vmem:[%s0 + $0x318] sm:$0xff]
  %v118 = vld [vmem:[%s0 + $0x320] sm:$0xff]
  %v119 = vld [vmem:[%s0 + $0x328] sm:$0xff]
  %v120 = vld [vmem:[%s0 + $0x330] sm:$0xff]
  %v121 = vld [vmem:[%s0 + $0x338] sm:$0xff]
  %v122 = vld [vmem:[%s0 + $0x340] sm:$0xff]
  %v123 = vld [vmem:[%s0 + $0x348] sm:$0xff]
  %v124 = vld [vmem:[%s0 + $0x350] sm:$0xff]
  %v125 = vld [vmem:[%s0 + $0x358] sm:$0xff]
  %v126 = vld [vmem:[%s2] sm:$0xff]
  %v127 = vld [vmem:[%s2 + $0x8] sm:$0xff]
  %129 = vset.pattern.permute.xlu0 0
  %130 = vperm.xlu0 %129, %v126
  %v131 = vpop.permute.xlu0 %130
  %134 = vset.pattern.permute.xlu0 0
  %135 = vperm.xlu0 %134, %v127
  %v136 = vpop.permute.xlu0 %135
  %vm138 = vcmask 130048
  %v140 = vsel %vm138, %v15, 0
  %v143 = vsel %vm138, %v17, 0
  %145 = vmatprep.subr.mxu0 %v109
  %146 = vmatpush1.msra.mxu0 %v108
  %147 = vmatprep.subr.mxu0 %v103
  %148 = vmatpush1.msra.mxu0 %v102
  %149 = vmatprep.subr.mxu0 %v97
  %150 = vmatpush1.msra.mxu0 %v96
  %151 = vmatprep.subr.mxu0 %v91
  %152 = vmatpush1.msra.mxu0 %v90
  %153 = vmatprep.subr.mxu0 %v85
  %154 = vmatpush1.msra.mxu0 %v84
  %155 = vmatprep.subr.mxu0 %v79
  %156 = vmatpush1.msra.mxu0 %v78
  %157 = vmatprep.subr.mxu0 %v73
  %158 = vmatpush1.msra.mxu0 %v72
  %159 = vmatprep.subr.mxu0 %v67
  %160 = vmatpush1.msra.mxu0 %v66
  %161 = vmatprep.subr.mxu0 %v61
  %162 = vmatpush1.msra.mxu0 %v60
  %163 = vmatprep.subr.mxu0 %v55
  %164 = vmatpush1.msra.mxu0 %v54
  %165 = vmatprep.subr.mxu0 %v49
  %166 = vmatpush1.msra.mxu0 %v48
  %167 = vmatprep.subr.mxu0 %v43
  %168 = vmatpush1.msra.mxu0 %v42
  %169 = vmatprep.subr.mxu0 %v37
  %170 = vmatpush1.msra.mxu0 %v36
  %171 = vmatprep.subr.mxu0 %v31
  %172 = vmatpush1.msra.mxu0 %v30
  %173 = vmatprep.subr.mxu0 %v25
  %174 = vmatpush1.msra.mxu0 %v24
  %175 = vmatprep.subr.mxu0 %v19
  %176 = vmatpush1.msra.mxu0 %v18
  %177 = vmatprep.subr.mxu0 0.0
  %178 = vmatpush2.msra.mxu0 0.0
  %179 = vmatprep.subr.mxu0 0.0
  %180 = vmatpush2.msra.mxu0 0.0
  %181 = vmatprep.subr.mxu0 0.0
  %182 = vmatpush2.msra.mxu0 0.0
  %183 = vmatprep.subr.mxu0 0.0
  %184 = vmatpush2.msra.mxu0 0.0
  %185 = vmatprep.subr.mxu0 0.0
  %186 = vmatpush2.msra.mxu0 0.0
  %187 = vmatprep.subr.mxu0 0.0
  %188 = vmatpush2.msra.mxu0 0.0
  %189 = vmatprep.subr.mxu0 0.0
  %190 = vmatpush2.msra.mxu0 0.0
  %191 = vmatprep.subr.mxu0 0.0
  %192 = vmatpush2.msra.mxu0 0.0
  %193 = vmatprep.subr.mxu0 0.0
  %194 = vmatpush2.msra.mxu0 0.0
  %195 = vmatprep.subr.mxu0 0.0
  %196 = vmatpush2.msra.mxu0 0.0
  %197 = vmatprep.subr.mxu0 0.0
  %198 = vmatpush2.msra.mxu0 0.0
  %199 = vmatprep.subr.mxu0 0.0
  %200 = vmatpush2.msra.mxu0 0.0
  %201 = vmatprep.subr.mxu0 0.0
  %202 = vmatpush2.msra.mxu0 0.0
  %203 = vmatprep.subr.mxu0 0.0
  %204 = vmatpush2.msra.mxu0 0.0
  %205 = vmatprep.subr.mxu0 %v121
  %206 = vmatpush2.msra.mxu0 %v120
  %207 = vmatprep.subr.mxu0 %v115
  %208 = vmatpush2.msra.mxu0 %v114
  %209 = vmatprep.mubr.f32.mxu0 %v140
  %210 = vmatmul.mubr.f32.gmra.mxu0 %v14
  %v211 = vpop.f32.mrf.mxu0
  %v212 = vadd.f32 %v131, %v211
  %v213 = vpop.f32.mrf.mxu0
  %v214 = vadd.f32 %v131, %v213
  %215 = vmatprep.mubr.f32.mxu0 %v143
  %216 = vmatmul.mubr.f32.gmra.mxu0 %v16
  %v217 = vpop.f32.mrf.mxu0
  %v218 = vadd.f32 %v136, %v217
  %v219 = vpop.f32.mrf.mxu0
  %v220 = vadd.f32 %v136, %v219
  %221 = vdwg.mxu0
  %222 = vmatprep.subr.mxu0 %v111
  %223 = vmatpush1.msra.mxu0 %v110
  %224 = vmatprep.subr.mxu0 %v105
  %225 = vmatpush1.msra.mxu0 %v104
  %226 = vmatprep.subr.mxu0 %v99
  %227 = vmatpush1.msra.mxu0 %v98
  %228 = vmatprep.subr.mxu0 %v93
  %229 = vmatpush1.msra.mxu0 %v92
  %230 = vmatprep.subr.mxu0 %v87
  %231 = vmatpush1.msra.mxu0 %v86
  %232 = vmatprep.subr.mxu0 %v81
  %233 = vmatpush1.msra.mxu0 %v80
  %234 = vmatprep.subr.mxu0 %v75
  %235 = vmatpush1.msra.mxu0 %v74
  %236 = vmatprep.subr.mxu0 %v69
  %237 = vmatpush1.msra.mxu0 %v68
  %238 = vmatprep.subr.mxu0 %v63
  %239 = vmatpush1.msra.mxu0 %v62
  %240 = vmatprep.subr.mxu0 %v57
  %241 = vmatpush1.msra.mxu0 %v56
  %242 = vmatprep.subr.mxu0 %v51
  %243 = vmatpush1.msra.mxu0 %v50
  %244 = vmatprep.subr.mxu0 %v45
  %245 = vmatpush1.msra.mxu0 %v44
  %246 = vmatprep.subr.mxu0 %v39
  %247 = vmatpush1.msra.mxu0 %v38
  %248 = vmatprep.subr.mxu0 %v33
  %249 = vmatpush1.msra.mxu0 %v32
  %250 = vmatprep.subr.mxu0 %v27
  %251 = vmatpush1.msra.mxu0 %v26
  %252 = vmatprep.subr.mxu0 %v21
  %253 = vmatpush1.msra.mxu0 %v20
  %254 = vmatprep.subr.mxu0 0.0
  %255 = vmatpush2.msra.mxu0 0.0
  %256 = vmatprep.subr.mxu0 0.0
  %257 = vmatpush2.msra.mxu0 0.0
  %258 = vmatprep.subr.mxu0 0.0
  %259 = vmatpush2.msra.mxu0 0.0
  %260 = vmatprep.subr.mxu0 0.0
  %261 = vmatpush2.msra.mxu0 0.0
  %262 = vmatprep.subr.mxu0 0.0
  %263 = vmatpush2.msra.mxu0 0.0
  %264 = vmatprep.subr.mxu0 0.0
  %265 = vmatpush2.msra.mxu0 0.0
  %266 = vmatprep.subr.mxu0 0.0
  %267 = vmatpush2.msra.mxu0 0.0
  %268 = vmatprep.subr.mxu0 0.0
  %269 = vmatpush2.msra.mxu0 0.0
  %270 = vmatprep.subr.mxu0 0.0
  %271 = vmatpush2.msra.mxu0 0.0
  %272 = vmatprep.subr.mxu0 0.0
  %273 = vmatpush2.msra.mxu0 0.0
  %274 = vmatprep.subr.mxu0 0.0
  %275 = vmatpush2.msra.mxu0 0.0
  %276 = vmatprep.subr.mxu0 0.0
  %277 = vmatpush2.msra.mxu0 0.0
  %278 = vmatprep.subr.mxu0 0.0
  %279 = vmatpush2.msra.mxu0 0.0
  %280 = vmatprep.subr.mxu0 0.0
  %281 = vmatpush2.msra.mxu0 0.0
  %282 = vmatprep.subr.mxu0 %v123
  %283 = vmatpush2.msra.mxu0 %v122
  %284 = vmatprep.subr.mxu0 %v117
  %285 = vmatpush2.msra.mxu0 %v116
  %286 = vmatprep.mubr.f32.mxu0 %v140
  %287 = vmatmul.mubr.f32.gmra.mxu0 %v14
  %v288 = vpop.f32.mrf.mxu0
  %v289 = vadd.f32 %v131, %v288
  %v290 = vpop.f32.mrf.mxu0
  %v291 = vadd.f32 %v131, %v290
  %292 = vmatprep.mubr.f32.mxu0 %v143
  %293 = vmatmul.mubr.f32.gmra.mxu0 %v16
  %v294 = vpop.f32.mrf.mxu0
  %v295 = vadd.f32 %v136, %v294
  %v296 = vpop.f32.mrf.mxu0
  %v297 = vadd.f32 %v136, %v296
  %298 = vdwg.mxu0
  %299 = vmatprep.subr.mxu0 %v113
  %300 = vmatpush1.msra.mxu0 %v112
  %301 = vmatprep.subr.mxu0 %v107
  %302 = vmatpush1.msra.mxu0 %v106
  %303 = vmatprep.subr.mxu0 %v101
  %304 = vmatpush1.msra.mxu0 %v100
  %305 = vmatprep.subr.mxu0 %v95
  %306 = vmatpush1.msra.mxu0 %v94
  %307 = vmatprep.subr.mxu0 %v89
  %308 = vmatpush1.msra.mxu0 %v88
  %309 = vmatprep.subr.mxu0 %v83
  %310 = vmatpush1.msra.mxu0 %v82
  %311 = vmatprep.subr.mxu0 %v77
  %312 = vmatpush1.msra.mxu0 %v76
  %313 = vmatprep.subr.mxu0 %v71
  %314 = vmatpush1.msra.mxu0 %v70
  %315 = vmatprep.subr.mxu0 %v65
  %316 = vmatpush1.msra.mxu0 %v64
  %317 = vmatprep.subr.mxu0 %v59
  %318 = vmatpush1.msra.mxu0 %v58
  %319 = vmatprep.subr.mxu0 %v53
  %320 = vmatpush1.msra.mxu0 %v52
  %321 = vmatprep.subr.mxu0 %v47
  %322 = vmatpush1.msra.mxu0 %v46
  %323 = vmatprep.subr.mxu0 %v41
  %324 = vmatpush1.msra.mxu0 %v40
  %325 = vmatprep.subr.mxu0 %v35
  %326 = vmatpush1.msra.mxu0 %v34
  %327 = vmatprep.subr.mxu0 %v29
  %328 = vmatpush1.msra.mxu0 %v28
  %329 = vmatprep.subr.mxu0 %v23
  %330 = vmatpush1.msra.mxu0 %v22
  %331 = vmatprep.subr.mxu0 0.0
  %332 = vmatpush2.msra.mxu0 0.0
  %333 = vmatprep.subr.mxu0 0.0
  %334 = vmatpush2.msra.mxu0 0.0
  %335 = vmatprep.subr.mxu0 0.0
  %336 = vmatpush2.msra.mxu0 0.0
  %337 = vmatprep.subr.mxu0 0.0
  %338 = vmatpush2.msra.mxu0 0.0
  %339 = vmatprep.subr.mxu0 0.0
  %340 = vmatpush2.msra.mxu0 0.0
  %341 = vmatprep.subr.mxu0 0.0
  %342 = vmatpush2.msra.mxu0 0.0
  %343 = vmatprep.subr.mxu0 0.0
  %344 = vmatpush2.msra.mxu0 0.0
  %345 = vmatprep.subr.mxu0 0.0
  %346 = vmatpush2.msra.mxu0 0.0
  %347 = vmatprep.subr.mxu0 0.0
  %348 = vmatpush2.msra.mxu0 0.0
  %349 = vmatprep.subr.mxu0 0.0
  %350 = vmatpush2.msra.mxu0 0.0
  %351 = vmatprep.subr.mxu0 0.0
  %352 = vmatpush2.msra.mxu0 0.0
  %353 = vmatprep.subr.mxu0 0.0
  %354 = vmatpush2.msra.mxu0 0.0
  %355 = vmatprep.subr.mxu0 0.0
  %356 = vmatpush2.msra.mxu0 0.0
  %357 = vmatprep.subr.mxu0 0.0
  %358 = vmatpush2.msra.mxu0 0.0
  %359 = vmatprep.subr.mxu0 %v125
  %360 = vmatpush2.msra.mxu0 %v124
  %361 = vmatprep.subr.mxu0 %v119
  %362 = vmatpush2.msra.mxu0 %v118
  %363 = vmatprep.mubr.f32.mxu0 %v140
  %364 = vmatmul.mubr.f32.gmra.mxu0 %v14
  %v365 = vpop.f32.mrf.mxu0
  %v366 = vadd.f32 %v131, %v365
  %v367 = vpop.f32.mrf.mxu0
  %v368 = vadd.f32 %v131, %v367
  %369 = vmatprep.mubr.f32.mxu0 %v143
  %370 = vmatmul.mubr.f32.gmra.mxu0 %v16
  %v371 = vpop.f32.mrf.mxu0
  %v372 = vadd.f32 %v136, %v371
  %v373 = vpop.f32.mrf.mxu0
  %v374 = vadd.f32 %v136, %v373
  %375 = vdwg.mxu0
  %376 = vst [vmem:[%s3] sm:$0xff] %v212
  %377 = vst [vmem:[%s3 + $0x8] sm:$0xff] %v214
  %378 = vst [vmem:[%s3 + $0x10] sm:$0xff] %v289
  %379 = vst [vmem:[%s3 + $0x18] sm:$0xff] %v291
  %380 = vst [vmem:[%s3 + $0x20] sm:$0xff] %v366
  %381 = vst [vmem:[%s3 + $0x28] sm:$0xff] %v368
  %382 = vst [vmem:[%s3 + $0x30] sm:$0xff] %v218
  %383 = vst [vmem:[%s3 + $0x38] sm:$0xff] %v220
  %384 = vst [vmem:[%s3 + $0x40] sm:$0xff] %v295
  %385 = vst [vmem:[%s3 + $0x48] sm:$0xff] %v297
  %386 = vst [vmem:[%s3 + $0x50] sm:$0xff] %v372
  %387 = vst [vmem:[%s3 + $0x58] sm:$0xff] %v374
  // Predicated region
  $region14: #{conv2d_pallas.1} parent=0 // pred_check
    _
  $region15: #{conv2d_pallas.1} parent=0 // pred_check_branch
    %389 = sbr.rel (0) target = $region17
  $region16: #{conv2d_pallas.1} parent=0 // pred_region
    _
  $region17: #{conv2d_pallas.1} parent=0 // pred_fallthru
    _
  // Predicated region
  $region18: #{conv2d_pallas.1} parent=0 // pred_check
    _
  $region19: #{conv2d_pallas.1} parent=0 // pred_check_branch
    %391 = sbr.rel (0) target = $region21
  $region20: #{conv2d_pallas.1} parent=0 // pred_region
    _
  $region21: #{conv2d_pallas.1} parent=0 // pred_fallthru
    _

</llo_original>
